<compile_context>
chip_gen: v6e
topology: v6e:2x2x1
jax: 0.10.0
libtpu: 0.0.40
codegen_flags: <defaults>
</compile_context>

<pallas_src>
import functools

import numpy as np
import jax
import jax.numpy as jnp
from jax.experimental import pallas as pl
from jax.experimental.pallas import tpu as pltpu

NUM_LEVELS = 3  # module-level constant in the reference code


def _level_geometry(h, w, num_levels):
    """Replicates F.avg_pool2d(kernel_size=k, stride=k) output-size math."""
    levels = []
    for i in range(num_levels):
        k = h // (2 ** i)
        oh = (h - k) // k + 1
        ow = (w - k) // k + 1
        # The PyTorch module derives k from h only -> (near-)square assumption.
        assert k >= 1 and oh >= 1 and ow >= 1, (
            f"SPPLayer assumes h >= 2**(num_levels-1) and w >= k; "
            f"got h={h}, w={w}, level={i}")
        levels.append((k, oh, ow))
    return levels


def _build_pool_matrix(h, w, levels):
    """Stacked pooling matrix: row r has 1/(k*k) on the pixels of window r."""
    rows = []
    for (k, oh, ow) in levels:
        inv = np.float32(1.0 / (k * k))
        for oi in range(oh):
            for oj in range(ow):
                m = np.zeros((h, w), dtype=np.float32)
                m[oi * k:(oi + 1) * k, oj * k:(oj + 1) * k] = inv
                rows.append(m.reshape(-1))
    return np.stack(rows, axis=0)  # (total_windows, h*w), float32


def _spp_kernel(b_blk, pool_ref, x_ref, o_ref):
    # pool_ref: (TW, HW) f32 pooling matrix, same block every grid step.
    # x_ref:    (b_blk, HW, c_blk) input block, channels on the lane axis.
    # o_ref:    (b_blk, TW, c_blk) fused all-levels output block.
    p = pool_ref[...]
    for i in range(b_blk):  # static, small (<= 8): fully unrolled
        xb = x_ref[i].astype(jnp.float32)                  # (HW, c_blk)
        r = jnp.dot(p, xb,
                    preferred_element_type=jnp.float32,
                    precision=jax.lax.Precision.HIGHEST)   # (TW, c_blk) on MXU
        o_ref[i] = r.astype(o_ref.dtype)                   # lane-dense store


def _largest_divisor_leq(n, cap):
    cap = max(1, min(n, cap))
    for d in range(cap, 0, -1):
        if n % d == 0:
            return d
    return 1


def spp_layer(x, num_levels=NUM_LEVELS):
    bs, c, h, w = x.shape
    levels = _level_geometry(h, w, num_levels)
    pool = jnp.asarray(_build_pool_matrix(h, w, levels))   # (TW, HW) f32
    tw, hw = pool.shape

    # ---- tile-size selection -------------------------------------------
    itemsize = x.dtype.itemsize
    target_bytes = 2 * 1024 * 1024            # ~2 MiB input block per grid step

    # Channel blocking (free for correctness; useful for large C / v7x VMEM).
    # Only block when C is a multiple of 128 so blocks stay lane-aligned.
    c_blk = c
    if c % 128 == 0:
        while (c_blk > 128 and c_blk % 2 == 0
               and hw * c_blk * itemsize > target_bytes):
            c_blk //= 2

    per_img_bytes = hw * c_blk * itemsize
    b_cap = max(1, min(8, target_bytes // max(per_img_bytes, 1)))
    b_blk = _largest_divisor_leq(bs, b_cap)
    # Keep >= 2 grid steps when possible so both v7x TensorCores get work.
    if (bs // b_blk) * (c // c_blk) < 2 and b_blk > 1:
        b_blk = _largest_divisor_leq(bs, b_blk // 2)

    grid = (bs // b_blk, c // c_blk)

    # Layout plumbing: NCHW -> (B, H*W, C) so channels sit on lanes in-kernel.
    x_hwc = jnp.transpose(x.reshape(bs, c, hw), (0, 2, 1))

    out = pl.pallas_call(
        functools.partial(_spp_kernel, b_blk),
        out_shape=jax.ShapeDtypeStruct((bs, tw, c), x.dtype),
        grid=grid,
        in_specs=[
            pl.BlockSpec((tw, hw), lambda b, cj: (0, 0)),            # pooling matrix
            pl.BlockSpec((b_blk, hw, c_blk), lambda b, cj: (b, 0, cj)),
        ],
        out_specs=pl.BlockSpec((b_blk, tw, c_blk), lambda b, cj: (b, 0, cj)),
        compiler_params=pltpu.CompilerParams(
            dimension_semantics=("parallel", "parallel")),
    )(pool, x_hwc)

    # Glue: per level, reorder (bs, n_l, C) into the channel-major flatten
    # that torch's `.view(bs, -1)` produces, then concatenate the levels.
    chunks = []
    off = 0
    for (_, oh, ow) in levels:
        n = oh * ow
        lvl = out[:, off:off + n, :]                                  # (bs, n, C)
        chunks.append(jnp.transpose(lvl, (0, 2, 1)).reshape(bs, -1))  # (bs, C*n)
        off += n
    return jnp.concatenate(chunks, axis=-1)


def _spp_reference(x, num_levels=NUM_LEVELS):
    """Pure-JAX reference mirroring F.avg_pool2d(k, stride=k).view(bs, -1) + cat."""
    bs, c, h, w = x.shape
    chunks = []
    for (k, oh, ow) in _level_geometry(h, w, num_levels):
        xt = x[:, :, : oh * k, : ow * k].astype(jnp.float32)
        xt = xt.reshape(bs, c, oh, k, ow, k).mean(axis=(3, 5))
        chunks.append(xt.reshape(bs, -1).astype(x.dtype))
    return jnp.concatenate(chunks, axis=-1)


if __name__ == "__main__":
    key = jax.random.PRNGKey(0)
    # Small NCHW input consistent with the module: batch=2, channels=4, 16x16 spatial.
    x = jax.random.normal(key, (2, 4, 16, 16), dtype=jnp.float32)

    out = jax.block_until_ready(spp_layer(x))
    ref = _spp_reference(x)

    assert out.shape == (2, 4 * (1 + 4 + 16)), out.shape
    assert jnp.allclose(out, ref, atol=1e-4, rtol=1e-4), (
        "mismatch vs reference, max abs err = "
        f"{float(jnp.max(jnp.abs(out - ref)))}")

    print("KERNEL_OK")
</pallas_src>

<mosaic_0001>
module attributes {stable_mosaic.version = 11 : i64} {
  func.func @_spp_kernel(%arg0: i32, %arg1: i32, %arg2: memref<21x256xf32, #tpu.memory_space<vmem>>, %arg3: memref<1x256x4xf32, #tpu.memory_space<vmem>>, %arg4: memref<1x21x4xf32, #tpu.memory_space<vmem>>) attributes {dimension_semantics = [#tpu.dimension_semantics<parallel>, #tpu.dimension_semantics<parallel>], iteration_bounds = array<i64: 2, 1>, scalar_prefetch = 0 : i64, scratch_operands = 0 : i64, tpu.core_type = #tpu.core_type<tc>, window_params = [{pipeline_mode = #tpu.pipeline_mode<synchronous>, transform_indices = @transform_0, window_bounds = array<i64: 21, 256>}, {transform_indices = @transform_1, window_bounds = array<i64: 1, 256, 4>}, {transform_indices = @transform_2, window_bounds = array<i64: 1, 21, 4>}]} {
    %c0 = arith.constant 0 : index
    %c0_0 = arith.constant 0 : index
    %0 = vector.load %arg2[%c0, %c0_0] : memref<21x256xf32, #tpu.memory_space<vmem>>, vector<21x256xf32>
    %c0_1 = arith.constant 0 : index
    %c0_2 = arith.constant 0 : index
    %c0_3 = arith.constant 0 : index
    %1 = vector.load %arg3[%c0_1, %c0_2, %c0_3] : memref<1x256x4xf32, #tpu.memory_space<vmem>>, vector<1x256x4xf32>
    %2 = vector.shape_cast %1 : vector<1x256x4xf32> to vector<256x4xf32>
    %cst = arith.constant dense<0.000000e+00> : vector<21x4xf32>
    %3 = tpu.matmul %0, %2, %cst {dimension_numbers = #tpu.dot_dimension_numbers<[1], [0], [0], [1], [0, 0, 1, 1], [], []>, precision = #tpu.contract_precision<fp32>} : vector<21x256xf32>, vector<256x4xf32>, vector<21x4xf32> -> vector<21x4xf32>
    %c0_4 = arith.constant 0 : index
    %c0_5 = arith.constant 0 : index
    %c0_6 = arith.constant 0 : index
    %4 = vector.load %arg4[%c0_4, %c0_5, %c0_6] : memref<1x21x4xf32, #tpu.memory_space<vmem>>, vector<1x21x4xf32>
    %5 = vector.shape_cast %4 : vector<1x21x4xf32> to vector<21x4xf32>
    %6 = vector.shape_cast %3 : vector<21x4xf32> to vector<1x21x4xf32>
    tpu.vector_store %arg4[%c0_4, %c0_5, %c0_6], %6 {strides = array<i32>} : memref<1x21x4xf32, #tpu.memory_space<vmem>>, vector<1x21x4xf32>,
    return
  }
  func.func @transform_0(%arg0: i32, %arg1: i32) -> (i32, i32) {
    %c0_i32 = arith.constant 0 : i32
    %c0_i32_0 = arith.constant 0 : i32
    %c0_i32_1 = arith.constant 0 : i32
    return %c0_i32, %c0_i32_0 : i32, i32
  }
  func.func @transform_1(%arg0: i32, %arg1: i32) -> (i32, i32, i32) {
    %c0_i32 = arith.constant 0 : i32
    %c0_i32_0 = arith.constant 0 : i32
    return %arg0, %c0_i32, %arg1 : i32, i32, i32
  }
  func.func @transform_2(%arg0: i32, %arg1: i32) -> (i32, i32, i32) {
    %c0_i32 = arith.constant 0 : i32
    %c0_i32_0 = arith.constant 0 : i32
    return %arg0, %c0_i32, %arg1 : i32, i32, i32
  }
}

</mosaic_0001>

<llo_original>
// kernel: tpu_custom_call.1
$region0: #{tpu_custom_call.1}
  #allocation0 [shape = 'u32[]', space=smem, size = 0x4, offset = 0x4, fixed_abs, tag = 'smem constant byte address 0x4 - core index']
  #allocation1 [shape = 'u32[144,128]{1,0:T(1,128)}', space=vmem, size = 0x12000, scoped, tag = 'internal scratch']
  %s0 = inlined_call_operand.vmem [shape: f32[21,256], index: 0, kind: input, shape index: {}]
  %s1 = inlined_call_operand.vmem [shape: f32[2,256,4], index: 1, kind: input, shape index: {}]
  %s2 = inlined_call_operand.vmem [shape: f32[2,21,4], index: 2, kind: output, shape index: {}]
  %s3 = sld [smem:[#allocation0]]
  $region41: #{tpu_custom_call.1} parent=0
    _
  %s5 = ssub.s32 1, %s3
  %s6 = scalar_select 0, %s5, %s3
  loop: start=0, step=1, limit=4
  $region2: #{tpu_custom_call.1} parent=0 // loop_pre_header
    _
  $region3: #{tpu_custom_call.1} parent=0 // loop_header
    %s8 = sphi 0, %s12
    %p9 = scmp.ge.s32.totalorder %s8, 4
    %s15 = sphi 0, %s27
    %s16 = sphi 0, %s23
    %s17 = sphi 0, %s15
    %s18 = sphi 0, %s16
    %s19 = sphi 0, %s17
    %s20 = sphi 0, %s18
    %s28 = sphi 0, %s28
    %s30 = sphi 0, %s28
    %s31 = sphi 0, %s30
    %s45 = sphi 0, %s31
    %s53 = sphi 0, %s55
    %s56 = sphi 0, %s53
    %s57 = sphi 0, %s56
    %s73 = sphi 0, %s57
    %s81 = sphi 0, %s83
    %s84 = sphi 0, %s81
    %s85 = sphi 0, %s84
    %s101 = sphi 0, %s85
  $region4: #{tpu_custom_call.1} parent=0 // loop_header_branch
    %11 = sbr.rel (%p9) target = $region8
  $region5: #{tpu_custom_call.1} parent=0 // loop_body
    %s13 = ssub.s32 %s8, 1
    %s14 = ssub.s32 %s8, 2
    %s21 = sadd.s32 1, %s16
    %p22 = scmp.ge.s32.totalorder %s21, 1
    %s23 = scalar_select %p22, 0, %s21
    %s24 = sadd.s32 1, %s15
    %s25 = scalar_select %p22, %s24, %s15
    %p26 = scmp.ge.s32.totalorder %s25, 2
    %s27 = scalar_select %p26, 0, %s25
    %s29 = sadd.s32 %s28, 1
    %p32 = scmp.eq.s32.totalorder %s8, 1
    %p33 = scmp.ne.s32.totalorder %s28, %s30
    %p34 = scmp.eq.s32.totalorder %s8, 0
    %p35 = por %p33, %p34
    %p36 = scmp.ne.s32.totalorder %s28, %s30
    %p37 = scmp.eq.s32.totalorder %s13, 1
    %p38 = por %p36, %p37
    %p39 = scmp.ne.s32.totalorder %s30, %s31
    %p40 = scmp.eq.s32.totalorder %s13, 0
    %p41 = por %p39, %p40
    %p42 = scmp.ne.s32.totalorder %s30, %s31
    %p43 = scmp.eq.s32.totalorder %s14, 1
    %p44 = por %p42, %p43
    %p46 = scmp.ne.s32.totalorder %s31, %s45
    %p47 = scmp.eq.s32.totalorder %s14, 0
    %p48 = por %p46, %p47
    %s49 = ssub.s32 %s15, %s27
    %s50 = ssub.s32 %s16, %s23
    %s51 = sor.u32 %s49, %s50
    %p52 = scmp.eq.s32.totalorder %s51, 0
    %s54 = sadd.s32 %s53, 1
    %s55 = scalar_select %p52, %s53, %s54
    %p58 = pneg %p52
    %p59 = scmp.eq.s32.totalorder %s8, 1
    %p60 = por %p58, %p59
    %p61 = scmp.ne.s32.totalorder %s53, %s56
    %p62 = scmp.eq.s32.totalorder %s8, 0
    %p63 = por %p61, %p62
    %p64 = scmp.ne.s32.totalorder %s53, %s56
    %p65 = scmp.eq.s32.totalorder %s13, 1
    %p66 = por %p64, %p65
    %p67 = scmp.ne.s32.totalorder %s56, %s57
    %p68 = scmp.eq.s32.totalorder %s13, 0
    %p69 = por %p67, %p68
    %p70 = scmp.ne.s32.totalorder %s56, %s57
    %p71 = scmp.eq.s32.totalorder %s14, 1
    %p72 = por %p70, %p71
    %p74 = scmp.ne.s32.totalorder %s57, %s73
    %p75 = scmp.eq.s32.totalorder %s14, 0
    %p76 = por %p74, %p75
    %s77 = ssub.s32 %s15, %s27
    %s78 = ssub.s32 %s16, %s23
    %s79 = sor.u32 %s77, %s78
    %p80 = scmp.eq.s32.totalorder %s79, 0
    %s82 = sadd.s32 %s81, 1
    %s83 = scalar_select %p80, %s81, %s82
    %p86 = pneg %p80
    %p87 = scmp.eq.s32.totalorder %s8, 1
    %p88 = por %p86, %p87
    %p89 = scmp.ne.s32.totalorder %s81, %s84
    %p90 = scmp.eq.s32.totalorder %s8, 0
    %p91 = por %p89, %p90
    %p92 = scmp.ne.s32.totalorder %s81, %s84
    %p93 = scmp.eq.s32.totalorder %s13, 1
    %p94 = por %p92, %p93
    %p95 = scmp.ne.s32.totalorder %s84, %s85
    %p96 = scmp.eq.s32.totalorder %s13, 0
    %p97 = por %p95, %p96
    %p98 = scmp.ne.s32.totalorder %s84, %s85
    %p99 = scmp.eq.s32.totalorder %s14, 1
    %p100 = por %p98, %p99
    %p102 = scmp.ne.s32.totalorder %s85, %s101
    %p103 = scmp.eq.s32.totalorder %s14, 0
    %p104 = por %p102, %p103
    %p105 = scmp.le.s32.totalorder 1, %s8
    %p106 = scmp.lt.s32.totalorder %s8, 3
    %p107 = pnand %p105, %p106
    %p108 = pneg %p107
    // Predicated region
    $region9: #{tpu_custom_call.1} parent=5 // pred_check
      _
    $region10: #{tpu_custom_call.1} parent=5 // pred_check_branch
      %110 = sbr.rel (%p107) target = $region12
    $region11: #{tpu_custom_call.1} parent=5 // pred_region
      %s111 = ssub.s32 %s8, 1
      // Predicated region
      $region13: #{tpu_custom_call.1} parent=11 // pred_check
        %p112 = pneg %p41
      $region14: #{tpu_custom_call.1} parent=11 // pred_check_branch
        %114 = sbr.rel (%p112) target = $region16
      $region15: #{tpu_custom_call.1} parent=11 // pred_region
        _
      $region16: #{tpu_custom_call.1} parent=11 // pred_fallthru
        _
    $region12: #{tpu_custom_call.1} parent=5 // pred_fallthru
      _
    %p115 = scmp.lt.s32.totalorder %s8, 2
    // Predicated region
    $region17: #{tpu_custom_call.1} parent=5 // pred_check
      %p116 = pneg %p115
    $region18: #{tpu_custom_call.1} parent=5 // pred_check_branch
      %118 = sbr.rel (%p116) target = $region20
    $region19: #{tpu_custom_call.1} parent=5 // pred_region
      // Predicated region
      $region21: #{tpu_custom_call.1} parent=19 // pred_check
        %p119 = pneg %p63
      $region22: #{tpu_custom_call.1} parent=19 // pred_check_branch
        %121 = sbr.rel (%p119) target = $region24
      $region23: #{tpu_custom_call.1} parent=19 // pred_region
        %p122 = scmp.lt.s32.totalorder %s15, 1
        %s123 = scalar_select %p122, %s15, 1
        %p124 = scmp.lt.s32.totalorder %s16, 0
        %s125 = scalar_select %p124, %s16, 0
        %s126 = smul.addr %s123, 32
        %s127 = sadd.s32 %s125, %s126
        %s128 = smul.addr %s127, 8
        %s129 = scalar_lea.vmem %s1, %s128
      $region24: #{tpu_custom_call.1} parent=19 // pred_fallthru
        _
    $region20: #{tpu_custom_call.1} parent=5 // pred_fallthru
      _
    %p130 = scmp.le.s32.totalorder 1, %s8
    %p131 = scmp.lt.s32.totalorder %s8, 3
    %p132 = pnand %p130, %p131
    %p133 = pneg %p132
    // Predicated region
    $region25: #{tpu_custom_call.1} parent=5 // pred_check
      _
    $region26: #{tpu_custom_call.1} parent=5 // pred_check_branch
      %135 = sbr.rel (%p132) target = $region28
    $region27: #{tpu_custom_call.1} parent=5 // pred_region
      %s136 = ssub.s32 %s8, 1
      %p137 = pneg %p41
      %p138 = pneg %p38
      %p139 = scmp.lt.s32.totalorder %s17, 1
      %s140 = scalar_select %p139, %s17, 1
      %p141 = scmp.lt.s32.totalorder %s18, 0
      %s142 = scalar_select %p141, %s18, 0
      %s143 = smul.addr %s140, 32
      %s144 = sadd.s32 %s142, %s143
      %s145 = smul.addr %s144, 8
      %s146 = scalar_lea.vmem %s1, %s145
      %p147 = pneg %p69
      %p148 = pneg %p66
      %p149 = pneg %p97
      %p150 = pneg %p94
      %p151 = scmp.lt.s32.totalorder %s17, 1
      %s152 = scalar_select %p151, %s17, 1
      %p153 = scmp.lt.s32.totalorder %s18, 0
      %s154 = scalar_select %p153, %s18, 0
      %s155 = smul.addr %s152, 3
      %s156 = sadd.s32 %s154, %s155
      %s157 = smul.addr %s156, 8
      %s158 = scalar_lea.vmem %s2, %s157
      %p159 = scmp.lt.s32.totalorder %s17, 1
      %s160 = scalar_select %p159, %s17, 1
      %p161 = scmp.lt.s32.totalorder %s18, 0
      %s162 = scalar_select %p161, %s18, 0
      %s163 = smul.addr %s160, 32
      %s164 = sadd.s32 %s162, %s163
      %s165 = smul.addr %s164, 8
      %s166 = scalar_lea.vmem %s1, %s165
      %p167 = scmp.lt.s32.totalorder %s17, 1
      %s168 = scalar_select %p167, %s17, 1
      %p169 = scmp.lt.s32.totalorder %s18, 0
      %s170 = scalar_select %p169, %s18, 0
      %s171 = smul.addr %s168, 3
      %s172 = sadd.s32 %s170, %s171
      %s173 = smul.addr %s172, 8
      %s174 = scalar_lea.vmem %s2, %s173
      %v175 = vld [vmem:[%s0] sm:$0xff]
      %v176 = vld [vmem:[%s0 + $0x8] sm:$0xff]
      %v177 = vld [vmem:[%s0 + $0x10] sm:$0xff]
      %v178 = vld [vmem:[%s0 + $0x18] sm:$0xff]
      %v179 = vld [vmem:[%s0 + $0x20] sm:$0x1f]
      %v180 = vld [vmem:[%s0 + $0x28] sm:$0x1f]
      %v181 = vld [vmem:[%s166] sm:$0xff]
      %v182 = vld [vmem:[%s166 + $0x8] sm:$0xff]
      %v183 = vld [vmem:[%s166 + $0x10] sm:$0xff]
      %v184 = vld [vmem:[%s166 + $0x18] sm:$0xff]
      %v185 = vld [vmem:[%s166 + $0x20] sm:$0xff]
      %v186 = vld [vmem:[%s166 + $0x28] sm:$0xff]
      %v187 = vld [vmem:[%s166 + $0x30] sm:$0xff]
      %v188 = vld [vmem:[%s166 + $0x38] sm:$0xff]
      %v189 = vld [vmem:[%s166 + $0x40] sm:$0xff]
      %v190 = vld [vmem:[%s166 + $0x48] sm:$0xff]
      %v191 = vld [vmem:[%s166 + $0x50] sm:$0xff]
      %v192 = vld [vmem:[%s166 + $0x58] sm:$0xff]
      %v193 = vld [vmem:[%s166 + $0x60] sm:$0xff]
      %v194 = vld [vmem:[%s166 + $0x68] sm:$0xff]
      %v195 = vld [vmem:[%s166 + $0x70] sm:$0xff]
      %v196 = vld [vmem:[%s166 + $0x78] sm:$0xff]
      %v197 = vld [vmem:[%s166 + $0x80] sm:$0xff]
      %v198 = vld [vmem:[%s166 + $0x88] sm:$0xff]
      %v199 = vld [vmem:[%s166 + $0x90] sm:$0xff]
      %v200 = vld [vmem:[%s166 + $0x98] sm:$0xff]
      %v201 = vld [vmem:[%s166 + $0xa0] sm:$0xff]
      %v202 = vld [vmem:[%s166 + $0xa8] sm:$0xff]
      %v203 = vld [vmem:[%s166 + $0xb0] sm:$0xff]
      %v204 = vld [vmem:[%s166 + $0xb8] sm:$0xff]
      %v205 = vld [vmem:[%s166 + $0xc0] sm:$0xff]
      %v206 = vld [vmem:[%s166 + $0xc8] sm:$0xff]
      %v207 = vld [vmem:[%s166 + $0xd0] sm:$0xff]
      %v208 = vld [vmem:[%s166 + $0xd8] sm:$0xff]
      %v209 = vld [vmem:[%s166 + $0xe0] sm:$0xff]
      %v210 = vld [vmem:[%s166 + $0xe8] sm:$0xff]
      %v211 = vld [vmem:[%s166 + $0xf0] sm:$0xff]
      %v212 = vld [vmem:[%s166 + $0xf8] sm:$0xff]
      %213 = vmatprep.subr.mxu0 0.0
      %v214 = vand.u32 %v196, 4294901760
      %215 = vmatpush1.msra.mxu0 %v214
      %216 = vmatprep.subr.mxu0 0.0
      %v217 = vand.u32 %v195, 4294901760
      %218 = vmatpush1.msra.mxu0 %v217
      %219 = vmatprep.subr.mxu0 0.0
      %v220 = vand.u32 %v194, 4294901760
      %221 = vmatpush1.msra.mxu0 %v220
      %222 = vmatprep.subr.mxu0 0.0
      %v223 = vand.u32 %v193, 4294901760
      %224 = vmatpush1.msra.mxu0 %v223
      %225 = vmatprep.subr.mxu0 0.0
      %v226 = vand.u32 %v192, 4294901760
      %227 = vmatpush1.msra.mxu0 %v226
      %228 = vmatprep.subr.mxu0 0.0
      %v229 = vand.u32 %v191, 4294901760
      %230 = vmatpush1.msra.mxu0 %v229
      %231 = vmatprep.subr.mxu0 0.0
      %v232 = vand.u32 %v190, 4294901760
      %233 = vmatpush1.msra.mxu0 %v232
      %234 = vmatprep.subr.mxu0 0.0
      %v235 = vand.u32 %v189, 4294901760
      %236 = vmatpush1.msra.mxu0 %v235
      %237 = vmatprep.subr.mxu0 0.0
      %v238 = vand.u32 %v188, 4294901760
      %239 = vmatpush1.msra.mxu0 %v238
      %240 = vmatprep.subr.mxu0 0.0
      %v241 = vand.u32 %v187, 4294901760
      %242 = vmatpush1.msra.mxu0 %v241
      %243 = vmatprep.subr.mxu0 0.0
      %v244 = vand.u32 %v186, 4294901760
      %245 = vmatpush1.msra.mxu0 %v244
      %246 = vmatprep.subr.mxu0 0.0
      %v247 = vand.u32 %v185, 4294901760
      %248 = vmatpush1.msra.mxu0 %v247
      %249 = vmatprep.subr.mxu0 0.0
      %v250 = vand.u32 %v184, 4294901760
      %251 = vmatpush1.msra.mxu0 %v250
      %252 = vmatprep.subr.mxu0 0.0
      %v253 = vand.u32 %v183, 4294901760
      %254 = vmatpush1.msra.mxu0 %v253
      %255 = vmatprep.subr.mxu0 0.0
      %v256 = vand.u32 %v182, 4294901760
      %257 = vmatpush1.msra.mxu0 %v256
      %258 = vmatprep.subr.mxu0 0.0
      %v259 = vand.u32 %v181, 4294901760
      %260 = vmatpush1.msra.mxu0 %v259
      %261 = vmatprep.subr.mxu0 0.0
      %v262 = vand.u32 %v212, 4294901760
      %263 = vmatpush2.msra.mxu0 %v262
      %264 = vmatprep.subr.mxu0 0.0
      %v265 = vand.u32 %v211, 4294901760
      %266 = vmatpush2.msra.mxu0 %v265
      %267 = vmatprep.subr.mxu0 0.0
      %v268 = vand.u32 %v210, 4294901760
      %269 = vmatpush2.msra.mxu0 %v268
      %270 = vmatprep.subr.mxu0 0.0
      %v271 = vand.u32 %v209, 4294901760
      %272 = vmatpush2.msra.mxu0 %v271
      %273 = vmatprep.subr.mxu0 0.0
      %v274 = vand.u32 %v208, 4294901760
      %275 = vmatpush2.msra.mxu0 %v274
      %276 = vmatprep.subr.mxu0 0.0
      %v277 = vand.u32 %v207, 4294901760
      %278 = vmatpush2.msra.mxu0 %v277
      %279 = vmatprep.subr.mxu0 0.0
      %v280 = vand.u32 %v206, 4294901760
      %281 = vmatpush2.msra.mxu0 %v280
      %282 = vmatprep.subr.mxu0 0.0
      %v283 = vand.u32 %v205, 4294901760
      %284 = vmatpush2.msra.mxu0 %v283
      %285 = vmatprep.subr.mxu0 0.0
      %v286 = vand.u32 %v204, 4294901760
      %287 = vmatpush2.msra.mxu0 %v286
      %288 = vmatprep.subr.mxu0 0.0
      %v289 = vand.u32 %v203, 4294901760
      %290 = vmatpush2.msra.mxu0 %v289
      %291 = vmatprep.subr.mxu0 0.0
      %v292 = vand.u32 %v202, 4294901760
      %293 = vmatpush2.msra.mxu0 %v292
      %294 = vmatprep.subr.mxu0 0.0
      %v295 = vand.u32 %v201, 4294901760
      %296 = vmatpush2.msra.mxu0 %v295
      %297 = vmatprep.subr.mxu0 0.0
      %v298 = vand.u32 %v200, 4294901760
      %299 = vmatpush2.msra.mxu0 %v298
      %300 = vmatprep.subr.mxu0 0.0
      %v301 = vand.u32 %v199, 4294901760
      %302 = vmatpush2.msra.mxu0 %v301
      %303 = vmatprep.subr.mxu0 0.0
      %v304 = vand.u32 %v198, 4294901760
      %305 = vmatpush2.msra.mxu0 %v304
      %306 = vmatprep.subr.mxu0 0.0
      %v307 = vand.u32 %v197, 4294901760
      %308 = vmatpush2.msra.mxu0 %v307
      %v309 = vand.u32 %v176, 4294901760
      %v310 = vsub.f32 %v176, %v309
      %v311 = vand.u32 %v310, 4294901760
      %v312 = vsub.f32 %v310, %v311
      %v313 = vand.u32 %v312, 4294901760
      %314 = vmatprep.mubr.f32.mxu0 %v313
      %v315 = vand.u32 %v175, 4294901760
      %v316 = vsub.f32 %v175, %v315
      %v317 = vand.u32 %v316, 4294901760
      %v318 = vsub.f32 %v316, %v317
      %v319 = vand.u32 %v318, 4294901760
      %320 = vmatmul.mubr.f32.gmra.mxu0 %v319
      %v321 = vpop.f32.mrf.mxu0
      %v322 = vadd.f32 0.0, %v321
      %v323 = vpop.f32.mrf.mxu0
      %v324 = vand.u32 %v178, 4294901760
      %v325 = vsub.f32 %v178, %v324
      %v326 = vand.u32 %v325, 4294901760
      %v327 = vsub.f32 %v325, %v326
      %v328 = vand.u32 %v327, 4294901760
      %329 = vmatprep.mubr.f32.mxu0 %v328
      %v330 = vand.u32 %v177, 4294901760
      %v331 = vsub.f32 %v177, %v330
      %v332 = vand.u32 %v331, 4294901760
      %v333 = vsub.f32 %v331, %v332
      %v334 = vand.u32 %v333, 4294901760
      %335 = vmatmul.mubr.f32.gmra.mxu0 %v334
      %v336 = vpop.f32.mrf.mxu0
      %v337 = vadd.f32 0.0, %v336
      %v338 = vpop.f32.mrf.mxu0
      %v339 = vand.u32 %v180, 4294901760
      %v340 = vsub.f32 %v180, %v339
      %v341 = vand.u32 %v340, 4294901760
      %v342 = vsub.f32 %v340, %v341
      %v343 = vand.u32 %v342, 4294901760
      %344 = vmatprep.mubr.f32.mxu0 %v343
      %v345 = vand.u32 %v179, 4294901760
      %v346 = vsub.f32 %v179, %v345
      %v347 = vand.u32 %v346, 4294901760
      %v348 = vsub.f32 %v346, %v347
      %v349 = vand.u32 %v348, 4294901760
      %350 = vmatmul.mubr.f32.gmra.mxu0 %v349
      %v351 = vpop.f32.mrf.mxu0
      %v352 = vadd.f32 0.0, %v351
      %v353 = vpop.f32.mrf.mxu0
      %354 = vdwg.mxu0
      %355 = vmatprep.subr.mxu0 0.0
      %v356 = vand.u32 %v196, 4294901760
      %v357 = vsub.f32 %v196, %v356
      %v358 = vand.u32 %v357, 4294901760
      %v359 = vsub.f32 %v357, %v358
      %v360 = vand.u32 %v359, 4294901760
      %361 = vmatpush1.msra.mxu0 %v360
      %362 = vmatprep.subr.mxu0 0.0
      %v363 = vand.u32 %v195, 4294901760
      %v364 = vsub.f32 %v195, %v363
      %v365 = vand.u32 %v364, 4294901760
      %v366 = vsub.f32 %v364, %v365
      %v367 = vand.u32 %v366, 4294901760
      %368 = vmatpush1.msra.mxu0 %v367
      %369 = vmatprep.subr.mxu0 0.0
      %v370 = vand.u32 %v194, 4294901760
      %v371 = vsub.f32 %v194, %v370
      %v372 = vand.u32 %v371, 4294901760
      %v373 = vsub.f32 %v371, %v372
      %v374 = vand.u32 %v373, 4294901760
      %375 = vmatpush1.msra.mxu0 %v374
      %376 = vmatprep.subr.mxu0 0.0
      %v377 = vand.u32 %v193, 4294901760
      %v378 = vsub.f32 %v193, %v377
      %v379 = vand.u32 %v378, 4294901760
      %v380 = vsub.f32 %v378, %v379
      %v381 = vand.u32 %v380, 4294901760
      %382 = vmatpush1.msra.mxu0 %v381
      %383 = vmatprep.subr.mxu0 0.0
      %v384 = vand.u32 %v192, 4294901760
      %v385 = vsub.f32 %v192, %v384
      %v386 = vand.u32 %v385, 4294901760
      %v387 = vsub.f32 %v385, %v386
      %v388 = vand.u32 %v387, 4294901760
      %389 = vmatpush1.msra.mxu0 %v388
      %390 = vmatprep.subr.mxu0 0.0
      %v391 = vand.u32 %v191, 4294901760
      %v392 = vsub.f32 %v191, %v391
      %v393 = vand.u32 %v392, 4294901760
      %v394 = vsub.f32 %v392, %v393
      %v395 = vand.u32 %v394, 4294901760
      %396 = vmatpush1.msra.mxu0 %v395
      %397 = vmatprep.subr.mxu0 0.0
      %v398 = vand.u32 %v190, 4294901760
      %v399 = vsub.f32 %v190, %v398
      %v400 = vand.u32 %v399, 4294901760
      %v401 = vsub.f32 %v399, %v400
      %v402 = vand.u32 %v401, 4294901760
      %403 = vmatpush1.msra.mxu0 %v402
      %404 = vmatprep.subr.mxu0 0.0
      %v405 = vand.u32 %v189, 4294901760
      %v406 = vsub.f32 %v189, %v405
      %v407 = vand.u32 %v406, 4294901760
      %v408 = vsub.f32 %v406, %v407
      %v409 = vand.u32 %v408, 4294901760
      %410 = vmatpush1.msra.mxu0 %v409
      %411 = vmatprep.subr.mxu0 0.0
      %v412 = vand.u32 %v188, 4294901760
      %v413 = vsub.f32 %v188, %v412
      %v414 = vand.u32 %v413, 4294901760
      %v415 = vsub.f32 %v413, %v414
      %v416 = vand.u32 %v415, 4294901760
      %417 = vmatpush1.msra.mxu0 %v416
      %418 = vmatprep.subr.mxu0 0.0
      %v419 = vand.u32 %v187, 4294901760
      %v420 = vsub.f32 %v187, %v419
      %v421 = vand.u32 %v420, 4294901760
      %v422 = vsub.f32 %v420, %v421
      %v423 = vand.u32 %v422, 4294901760
      %424 = vmatpush1.msra.mxu0 %v423
      %425 = vmatprep.subr.mxu0 0.0
      %v426 = vand.u32 %v186, 4294901760
      %v427 = vsub.f32 %v186, %v426
      %v428 = vand.u32 %v427, 4294901760
      %v429 = vsub.f32 %v427, %v428
      %v430 = vand.u32 %v429, 4294901760
      %431 = vmatpush1.msra.mxu0 %v430
      %432 = vmatprep.subr.mxu0 0.0
      %v433 = vand.u32 %v185, 4294901760
      %v434 = vsub.f32 %v185, %v433
      %v435 = vand.u32 %v434, 4294901760
      %v436 = vsub.f32 %v434, %v435
      %v437 = vand.u32 %v436, 4294901760
      %438 = vmatpush1.msra.mxu0 %v437
      %439 = vmatprep.subr.mxu0 0.0
      %v440 = vand.u32 %v184, 4294901760
      %v441 = vsub.f32 %v184, %v440
      %v442 = vand.u32 %v441, 4294901760
      %v443 = vsub.f32 %v441, %v442
      %v444 = vand.u32 %v443, 4294901760
      %445 = vmatpush1.msra.mxu0 %v444
      %446 = vmatprep.subr.mxu0 0.0
      %v447 = vand.u32 %v183, 4294901760
      %v448 = vsub.f32 %v183, %v447
      %v449 = vand.u32 %v448, 4294901760
      %v450 = vsub.f32 %v448, %v449
      %v451 = vand.u32 %v450, 4294901760
      %452 = vmatpush1.msra.mxu0 %v451
      %453 = vmatprep.subr.mxu0 0.0
      %v454 = vand.u32 %v182, 4294901760
      %v455 = vsub.f32 %v182, %v454
      %v456 = vand.u32 %v455, 4294901760
      %v457 = vsub.f32 %v455, %v456
      %v458 = vand.u32 %v457, 4294901760
      %459 = vmatpush1.msra.mxu0 %v458
      %460 = vmatprep.subr.mxu0 0.0
      %v461 = vand.u32 %v181, 4294901760
      %v462 = vsub.f32 %v181, %v461
      %v463 = vand.u32 %v462, 4294901760
      %v464 = vsub.f32 %v462, %v463
      %v465 = vand.u32 %v464, 4294901760
      %466 = vmatpush1.msra.mxu0 %v465
      %467 = vmatprep.subr.mxu0 0.0
      %v468 = vand.u32 %v212, 4294901760
      %v469 = vsub.f32 %v212, %v468
      %v470 = vand.u32 %v469, 4294901760
      %v471 = vsub.f32 %v469, %v470
      %v472 = vand.u32 %v471, 4294901760
      %473 = vmatpush2.msra.mxu0 %v472
      %474 = vmatprep.subr.mxu0 0.0
      %v475 = vand.u32 %v211, 4294901760
      %v476 = vsub.f32 %v211, %v475
      %v477 = vand.u32 %v476, 4294901760
      %v478 = vsub.f32 %v476, %v477
      %v479 = vand.u32 %v478, 4294901760
      %480 = vmatpush2.msra.mxu0 %v479
      %481 = vmatprep.subr.mxu0 0.0
      %v482 = vand.u32 %v210, 4294901760
      %v483 = vsub.f32 %v210, %v482
      %v484 = vand.u32 %v483, 4294901760
      %v485 = vsub.f32 %v483, %v484
      %v486 = vand.u32 %v485, 4294901760
      %487 = vmatpush2.msra.mxu0 %v486
      %488 = vmatprep.subr.mxu0 0.0
      %v489 = vand.u32 %v209, 4294901760
      %v490 = vsub.f32 %v209, %v489
      %v491 = vand.u32 %v490, 4294901760
      %v492 = vsub.f32 %v490, %v491
      %v493 = vand.u32 %v492, 4294901760
      %494 = vmatpush2.msra.mxu0 %v493
      %495 = vmatprep.subr.mxu0 0.0
      %v496 = vand.u32 %v208, 4294901760
      %v497 = vsub.f32 %v208, %v496
      %v498 = vand.u32 %v497, 4294901760
      %v499 = vsub.f32 %v497, %v498
      %v500 = vand.u32 %v499, 4294901760
      %501 = vmatpush2.msra.mxu0 %v500
      %502 = vmatprep.subr.mxu0 0.0
      %v503 = vand.u32 %v207, 4294901760
      %v504 = vsub.f32 %v207, %v503
      %v505 = vand.u32 %v504, 4294901760
      %v506 = vsub.f32 %v504, %v505
      %v507 = vand.u32 %v506, 4294901760
      %508 = vmatpush2.msra.mxu0 %v507
      %509 = vmatprep.subr.mxu0 0.0
      %v510 = vand.u32 %v206, 4294901760
      %v511 = vsub.f32 %v206, %v510
      %v512 = vand.u32 %v511, 4294901760
      %v513 = vsub.f32 %v511, %v512
      %v514 = vand.u32 %v513, 4294901760
      %515 = vmatpush2.msra.mxu0 %v514
      %516 = vmatprep.subr.mxu0 0.0
      %v517 = vand.u32 %v205, 4294901760
      %v518 = vsub.f32 %v205, %v517
      %v519 = vand.u32 %v518, 4294901760
      %v520 = vsub.f32 %v518, %v519
      %v521 = vand.u32 %v520, 4294901760
      %522 = vmatpush2.msra.mxu0 %v521
      %523 = vmatprep.subr.mxu0 0.0
      %v524 = vand.u32 %v204, 4294901760
      %v525 = vsub.f32 %v204, %v524
      %v526 = vand.u32 %v525, 4294901760
      %v527 = vsub.f32 %v525, %v526
      %v528 = vand.u32 %v527, 4294901760
      %529 = vmatpush2.msra.mxu0 %v528
      %530 = vmatprep.subr.mxu0 0.0
      %v531 = vand.u32 %v203, 4294901760
      %v532 = vsub.f32 %v203, %v531
      %v533 = vand.u32 %v532, 4294901760
      %v534 = vsub.f32 %v532, %v533
      %v535 = vand.u32 %v534, 4294901760
      %536 = vmatpush2.msra.mxu0 %v535
      %537 = vmatprep.subr.mxu0 0.0
      %v538 = vand.u32 %v202, 4294901760
      %v539 = vsub.f32 %v202, %v538
      %v540 = vand.u32 %v539, 4294901760
      %v541 = vsub.f32 %v539, %v540
      %v542 = vand.u32 %v541, 4294901760
      %543 = vmatpush2.msra.mxu0 %v542
      %544 = vmatprep.subr.mxu0 0.0
      %v545 = vand.u32 %v201, 4294901760
      %v546 = vsub.f32 %v201, %v545
      %v547 = vand.u32 %v546, 4294901760
      %v548 = vsub.f32 %v546, %v547
      %v549 = vand.u32 %v548, 4294901760
      %550 = vmatpush2.msra.mxu0 %v549
      %551 = vmatprep.subr.mxu0 0.0
      %v552 = vand.u32 %v200, 4294901760
      %v553 = vsub.f32 %v200, %v552
      %v554 = vand.u32 %v553, 4294901760
      %v555 = vsub.f32 %v553, %v554
      %v556 = vand.u32 %v555, 4294901760
      %557 = vmatpush2.msra.mxu0 %v556
      %558 = vmatprep.subr.mxu0 0.0
      %v559 = vand.u32 %v199, 4294901760
      %v560 = vsub.f32 %v199, %v559
      %v561 = vand.u32 %v560, 4294901760
      %v562 = vsub.f32 %v560, %v561
      %v563 = vand.u32 %v562, 4294901760
      %564 = vmatpush2.msra.mxu0 %v563
      %565 = vmatprep.subr.mxu0 0.0
      %v566 = vand.u32 %v198, 4294901760
      %v567 = vsub.f32 %v198, %v566
      %v568 = vand.u32 %v567, 4294901760
      %v569 = vsub.f32 %v567, %v568
      %v570 = vand.u32 %v569, 4294901760
      %571 = vmatpush2.msra.mxu0 %v570
      %572 = vmatprep.subr.mxu0 0.0
      %v573 = vand.u32 %v197, 4294901760
      %v574 = vsub.f32 %v197, %v573
      %v575 = vand.u32 %v574, 4294901760
      %v576 = vsub.f32 %v574, %v575
      %v577 = vand.u32 %v576, 4294901760
      %578 = vmatpush2.msra.mxu0 %v577
      %v579 = vand.u32 %v176, 4294901760
      %580 = vmatprep.mubr.f32.mxu0 %v579
      %v581 = vand.u32 %v175, 4294901760
      %582 = vmatmul.mubr.f32.gmra.mxu0 %v581
      %v583 = vpop.f32.mrf.mxu0
      %v584 = vadd.f32 %v322, %v583
      %v585 = vpop.f32.mrf.mxu0
      %v586 = vand.u32 %v178, 4294901760
      %587 = vmatprep.mubr.f32.mxu0 %v586
      %v588 = vand.u32 %v177, 4294901760
      %589 = vmatmul.mubr.f32.gmra.mxu0 %v588
      %v590 = vpop.f32.mrf.mxu0
      %v591 = vadd.f32 %v337, %v590
      %v592 = vpop.f32.mrf.mxu0
      %v593 = vand.u32 %v180, 4294901760
      %594 = vmatprep.mubr.f32.mxu0 %v593
      %v595 = vand.u32 %v179, 4294901760
      %596 = vmatmul.mubr.f32.gmra.mxu0 %v595
      %v597 = vpop.f32.mrf.mxu0
      %v598 = vadd.f32 %v352, %v597
      %v599 = vpop.f32.mrf.mxu0
      %600 = vdwg.mxu0
      %601 = vmatprep.subr.mxu0 0.0
      %v602 = vand.u32 %v196, 4294901760
      %v603 = vsub.f32 %v196, %v602
      %604 = vmatpush1.msra.mxu0 %v603
      %605 = vmatprep.subr.mxu0 0.0
      %v606 = vand.u32 %v195, 4294901760
      %v607 = vsub.f32 %v195, %v606
      %608 = vmatpush1.msra.mxu0 %v607
      %609 = vmatprep.subr.mxu0 0.0
      %v610 = vand.u32 %v194, 4294901760
      %v611 = vsub.f32 %v194, %v610
      %612 = vmatpush1.msra.mxu0 %v611
      %613 = vmatprep.subr.mxu0 0.0
      %v614 = vand.u32 %v193, 4294901760
      %v615 = vsub.f32 %v193, %v614
      %616 = vmatpush1.msra.mxu0 %v615
      %617 = vmatprep.subr.mxu0 0.0
      %v618 = vand.u32 %v192, 4294901760
      %v619 = vsub.f32 %v192, %v618
      %620 = vmatpush1.msra.mxu0 %v619
      %621 = vmatprep.subr.mxu0 0.0
      %v622 = vand.u32 %v191, 4294901760
      %v623 = vsub.f32 %v191, %v622
      %624 = vmatpush1.msra.mxu0 %v623
      %625 = vmatprep.subr.mxu0 0.0
      %v626 = vand.u32 %v190, 4294901760
      %v627 = vsub.f32 %v190, %v626
      %628 = vmatpush1.msra.mxu0 %v627
      %629 = vmatprep.subr.mxu0 0.0
      %v630 = vand.u32 %v189, 4294901760
      %v631 = vsub.f32 %v189, %v630
      %632 = vmatpush1.msra.mxu0 %v631
      %633 = vmatprep.subr.mxu0 0.0
      %v634 = vand.u32 %v188, 4294901760
      %v635 = vsub.f32 %v188, %v634
      %636 = vmatpush1.msra.mxu0 %v635
      %637 = vmatprep.subr.mxu0 0.0
      %v638 = vand.u32 %v187, 4294901760
      %v639 = vsub.f32 %v187, %v638
      %640 = vmatpush1.msra.mxu0 %v639
      %641 = vmatprep.subr.mxu0 0.0
      %v642 = vand.u32 %v186, 4294901760
      %v643 = vsub.f32 %v186, %v642
      %644 = vmatpush1.msra.mxu0 %v643
      %645 = vmatprep.subr.mxu0 0.0
      %v646 = vand.u32 %v185, 4294901760
      %v647 = vsub.f32 %v185, %v646
      %648 = vmatpush1.msra.mxu0 %v647
      %649 = vmatprep.subr.mxu0 0.0
      %v650 = vand.u32 %v184, 4294901760
      %v651 = vsub.f32 %v184, %v650
      %652 = vmatpush1.msra.mxu0 %v651
      %653 = vmatprep.subr.mxu0 0.0
      %v654 = vand.u32 %v183, 4294901760
      %v655 = vsub.f32 %v183, %v654
      %656 = vmatpush1.msra.mxu0 %v655
      %657 = vmatprep.subr.mxu0 0.0
      %v658 = vand.u32 %v182, 4294901760
      %v659 = vsub.f32 %v182, %v658
      %660 = vmatpush1.msra.mxu0 %v659
      %661 = vmatprep.subr.mxu0 0.0
      %v662 = vand.u32 %v181, 4294901760
      %v663 = vsub.f32 %v181, %v662
      %664 = vmatpush1.msra.mxu0 %v663
      %665 = vmatprep.subr.mxu0 0.0
      %v666 = vand.u32 %v212, 4294901760
      %v667 = vsub.f32 %v212, %v666
      %668 = vmatpush2.msra.mxu0 %v667
      %669 = vmatprep.subr.mxu0 0.0
      %v670 = vand.u32 %v211, 4294901760
      %v671 = vsub.f32 %v211, %v670
      %672 = vmatpush2.msra.mxu0 %v671
      %673 = vmatprep.subr.mxu0 0.0
      %v674 = vand.u32 %v210, 4294901760
      %v675 = vsub.f32 %v210, %v674
      %676 = vmatpush2.msra.mxu0 %v675
      %677 = vmatprep.subr.mxu0 0.0
      %v678 = vand.u32 %v209, 4294901760
      %v679 = vsub.f32 %v209, %v678
      %680 = vmatpush2.msra.mxu0 %v679
      %681 = vmatprep.subr.mxu0 0.0
      %v682 = vand.u32 %v208, 4294901760
      %v683 = vsub.f32 %v208, %v682
      %684 = vmatpush2.msra.mxu0 %v683
      %685 = vmatprep.subr.mxu0 0.0
      %v686 = vand.u32 %v207, 4294901760
      %v687 = vsub.f32 %v207, %v686
      %688 = vmatpush2.msra.mxu0 %v687
      %689 = vmatprep.subr.mxu0 0.0
      %v690 = vand.u32 %v206, 4294901760
      %v691 = vsub.f32 %v206, %v690
      %692 = vmatpush2.msra.mxu0 %v691
      %693 = vmatprep.subr.mxu0 0.0
      %v694 = vand.u32 %v205, 4294901760
      %v695 = vsub.f32 %v205, %v694
      %696 = vmatpush2.msra.mxu0 %v695
      %697 = vmatprep.subr.mxu0 0.0
      %v698 = vand.u32 %v204, 4294901760
      %v699 = vsub.f32 %v204, %v698
      %700 = vmatpush2.msra.mxu0 %v699
      %701 = vmatprep.subr.mxu0 0.0
      %v702 = vand.u32 %v203, 4294901760
      %v703 = vsub.f32 %v203, %v702
      %704 = vmatpush2.msra.mxu0 %v703
      %705 = vmatprep.subr.mxu0 0.0
      %v706 = vand.u32 %v202, 4294901760
      %v707 = vsub.f32 %v202, %v706
      %708 = vmatpush2.msra.mxu0 %v707
      %709 = vmatprep.subr.mxu0 0.0
      %v710 = vand.u32 %v201, 4294901760
      %v711 = vsub.f32 %v201, %v710
      %712 = vmatpush2.msra.mxu0 %v711
      %713 = vmatprep.subr.mxu0 0.0
      %v714 = vand.u32 %v200, 4294901760
      %v715 = vsub.f32 %v200, %v714
      %716 = vmatpush2.msra.mxu0 %v715
      %717 = vmatprep.subr.mxu0 0.0
      %v718 = vand.u32 %v199, 4294901760
      %v719 = vsub.f32 %v199, %v718
      %720 = vmatpush2.msra.mxu0 %v719
      %721 = vmatprep.subr.mxu0 0.0
      %v722 = vand.u32 %v198, 4294901760
      %v723 = vsub.f32 %v198, %v722
      %724 = vmatpush2.msra.mxu0 %v723
      %725 = vmatprep.subr.mxu0 0.0
      %v726 = vand.u32 %v197, 4294901760
      %v727 = vsub.f32 %v197, %v726
      %728 = vmatpush2.msra.mxu0 %v727
      %v729 = vand.u32 %v176, 4294901760
      %v730 = vsub.f32 %v176, %v729
      %731 = vmatprep.mubr.f32.mxu0 %v730
      %v732 = vand.u32 %v175, 4294901760
      %v733 = vsub.f32 %v175, %v732
      %734 = vmatmul.mubr.f32.gmra.mxu0 %v733
      %v735 = vpop.f32.mrf.mxu0
      %v736 = vadd.f32 %v584, %v735
      %v737 = vpop.f32.mrf.mxu0
      %v738 = vand.u32 %v178, 4294901760
      %v739 = vsub.f32 %v178, %v738
      %740 = vmatprep.mubr.f32.mxu0 %v739
      %v741 = vand.u32 %v177, 4294901760
      %v742 = vsub.f32 %v177, %v741
      %743 = vmatmul.mubr.f32.gmra.mxu0 %v742
      %v744 = vpop.f32.mrf.mxu0
      %v745 = vadd.f32 %v591, %v744
      %v746 = vpop.f32.mrf.mxu0
      %v747 = vand.u32 %v180, 4294901760
      %v748 = vsub.f32 %v180, %v747
      %749 = vmatprep.mubr.f32.mxu0 %v748
      %v750 = vand.u32 %v179, 4294901760
      %v751 = vsub.f32 %v179, %v750
      %752 = vmatmul.mubr.f32.gmra.mxu0 %v751
      %v753 = vpop.f32.mrf.mxu0
      %v754 = vadd.f32 %v598, %v753
      %v755 = vpop.f32.mrf.mxu0
      %756 = vdwg.mxu0
      %757 = vmatprep.subr.mxu0 0.0
      %v758 = vand.u32 %v196, 4294901760
      %759 = vmatpush1.msra.mxu0 %v758
      %760 = vmatprep.subr.mxu0 0.0
      %v761 = vand.u32 %v195, 4294901760
      %762 = vmatpush1.msra.mxu0 %v761
      %763 = vmatprep.subr.mxu0 0.0
      %v764 = vand.u32 %v194, 4294901760
      %765 = vmatpush1.msra.mxu0 %v764
      %766 = vmatprep.subr.mxu0 0.0
      %v767 = vand.u32 %v193, 4294901760
      %768 = vmatpush1.msra.mxu0 %v767
      %769 = vmatprep.subr.mxu0 0.0
      %v770 = vand.u32 %v192, 4294901760
      %771 = vmatpush1.msra.mxu0 %v770
      %772 = vmatprep.subr.mxu0 0.0
      %v773 = vand.u32 %v191, 4294901760
      %774 = vmatpush1.msra.mxu0 %v773
      %775 = vmatprep.subr.mxu0 0.0
      %v776 = vand.u32 %v190, 4294901760
      %777 = vmatpush1.msra.mxu0 %v776
      %778 = vmatprep.subr.mxu0 0.0
      %v779 = vand.u32 %v189, 4294901760
      %780 = vmatpush1.msra.mxu0 %v779
      %781 = vmatprep.subr.mxu0 0.0
      %v782 = vand.u32 %v188, 4294901760
      %783 = vmatpush1.msra.mxu0 %v782
      %784 = vmatprep.subr.mxu0 0.0
      %v785 = vand.u32 %v187, 4294901760
      %786 = vmatpush1.msra.mxu0 %v785
      %787 = vmatprep.subr.mxu0 0.0
      %v788 = vand.u32 %v186, 4294901760
      %789 = vmatpush1.msra.mxu0 %v788
      %790 = vmatprep.subr.mxu0 0.0
      %v791 = vand.u32 %v185, 4294901760
      %792 = vmatpush1.msra.mxu0 %v791
      %793 = vmatprep.subr.mxu0 0.0
      %v794 = vand.u32 %v184, 4294901760
      %795 = vmatpush1.msra.mxu0 %v794
      %796 = vmatprep.subr.mxu0 0.0
      %v797 = vand.u32 %v183, 4294901760
      %798 = vmatpush1.msra.mxu0 %v797
      %799 = vmatprep.subr.mxu0 0.0
      %v800 = vand.u32 %v182, 4294901760
      %801 = vmatpush1.msra.mxu0 %v800
      %802 = vmatprep.subr.mxu0 0.0
      %v803 = vand.u32 %v181, 4294901760
      %804 = vmatpush1.msra.mxu0 %v803
      %805 = vmatprep.subr.mxu0 0.0
      %v806 = vand.u32 %v212, 4294901760
      %807 = vmatpush2.msra.mxu0 %v806
      %808 = vmatprep.subr.mxu0 0.0
      %v809 = vand.u32 %v211, 4294901760
      %810 = vmatpush2.msra.mxu0 %v809
      %811 = vmatprep.subr.mxu0 0.0
      %v812 = vand.u32 %v210, 4294901760
      %813 = vmatpush2.msra.mxu0 %v812
      %814 = vmatprep.subr.mxu0 0.0
      %v815 = vand.u32 %v209, 4294901760
      %816 = vmatpush2.msra.mxu0 %v815
      %817 = vmatprep.subr.mxu0 0.0
      %v818 = vand.u32 %v208, 4294901760
      %819 = vmatpush2.msra.mxu0 %v818
      %820 = vmatprep.subr.mxu0 0.0
      %v821 = vand.u32 %v207, 4294901760
      %822 = vmatpush2.msra.mxu0 %v821
      %823 = vmatprep.subr.mxu0 0.0
      %v824 = vand.u32 %v206, 4294901760
      %825 = vmatpush2.msra.mxu0 %v824
      %826 = vmatprep.subr.mxu0 0.0
      %v827 = vand.u32 %v205, 4294901760
      %828 = vmatpush2.msra.mxu0 %v827
      %829 = vmatprep.subr.mxu0 0.0
      %v830 = vand.u32 %v204, 4294901760
      %831 = vmatpush2.msra.mxu0 %v830
      %832 = vmatprep.subr.mxu0 0.0
      %v833 = vand.u32 %v203, 4294901760
      %834 = vmatpush2.msra.mxu0 %v833
      %835 = vmatprep.subr.mxu0 0.0
      %v836 = vand.u32 %v202, 4294901760
      %837 = vmatpush2.msra.mxu0 %v836
      %838 = vmatprep.subr.mxu0 0.0
      %v839 = vand.u32 %v201, 4294901760
      %840 = vmatpush2.msra.mxu0 %v839
      %841 = vmatprep.subr.mxu0 0.0
      %v842 = vand.u32 %v200, 4294901760
      %843 = vmatpush2.msra.mxu0 %v842
      %844 = vmatprep.subr.mxu0 0.0
      %v845 = vand.u32 %v199, 4294901760
      %846 = vmatpush2.msra.mxu0 %v845
      %847 = vmatprep.subr.mxu0 0.0
      %v848 = vand.u32 %v198, 4294901760
      %849 = vmatpush2.msra.mxu0 %v848
      %850 = vmatprep.subr.mxu0 0.0
      %v851 = vand.u32 %v197, 4294901760
      %852 = vmatpush2.msra.mxu0 %v851
      %v853 = vand.u32 %v176, 4294901760
      %v854 = vsub.f32 %v176, %v853
      %v855 = vand.u32 %v854, 4294901760
      %856 = vmatprep.mubr.f32.mxu0 %v855
      %v857 = vand.u32 %v175, 4294901760
      %v858 = vsub.f32 %v175, %v857
      %v859 = vand.u32 %v858, 4294901760
      %860 = vmatmul.mubr.f32.gmra.mxu0 %v859
      %v861 = vpop.f32.mrf.mxu0
      %v862 = vadd.f32 %v736, %v861
      %v863 = vpop.f32.mrf.mxu0
      %v864 = vand.u32 %v178, 4294901760
      %v865 = vsub.f32 %v178, %v864
      %v866 = vand.u32 %v865, 4294901760
      %867 = vmatprep.mubr.f32.mxu0 %v866
      %v868 = vand.u32 %v177, 4294901760
      %v869 = vsub.f32 %v177, %v868
      %v870 = vand.u32 %v869, 4294901760
      %871 = vmatmul.mubr.f32.gmra.mxu0 %v870
      %v872 = vpop.f32.mrf.mxu0
      %v873 = vadd.f32 %v745, %v872
      %v874 = vpop.f32.mrf.mxu0
      %v875 = vand.u32 %v180, 4294901760
      %v876 = vsub.f32 %v180, %v875
      %v877 = vand.u32 %v876, 4294901760
      %878 = vmatprep.mubr.f32.mxu0 %v877
      %v879 = vand.u32 %v179, 4294901760
      %v880 = vsub.f32 %v179, %v879
      %v881 = vand.u32 %v880, 4294901760
      %882 = vmatmul.mubr.f32.gmra.mxu0 %v881
      %v883 = vpop.f32.mrf.mxu0
      %v884 = vadd.f32 %v754, %v883
      %v885 = vpop.f32.mrf.mxu0
      %886 = vdwg.mxu0
      %887 = vmatprep.subr.mxu0 0.0
      %v888 = vand.u32 %v196, 4294901760
      %v889 = vsub.f32 %v196, %v888
      %v890 = vand.u32 %v889, 4294901760
      %891 = vmatpush1.msra.mxu0 %v890
      %892 = vmatprep.subr.mxu0 0.0
      %v893 = vand.u32 %v195, 4294901760
      %v894 = vsub.f32 %v195, %v893
      %v895 = vand.u32 %v894, 4294901760
      %896 = vmatpush1.msra.mxu0 %v895
      %897 = vmatprep.subr.mxu0 0.0
      %v898 = vand.u32 %v194, 4294901760
      %v899 = vsub.f32 %v194, %v898
      %v900 = vand.u32 %v899, 4294901760
      %901 = vmatpush1.msra.mxu0 %v900
      %902 = vmatprep.subr.mxu0 0.0
      %v903 = vand.u32 %v193, 4294901760
      %v904 = vsub.f32 %v193, %v903
      %v905 = vand.u32 %v904, 4294901760
      %906 = vmatpush1.msra.mxu0 %v905
      %907 = vmatprep.subr.mxu0 0.0
      %v908 = vand.u32 %v192, 4294901760
      %v909 = vsub.f32 %v192, %v908
      %v910 = vand.u32 %v909, 4294901760
      %911 = vmatpush1.msra.mxu0 %v910
      %912 = vmatprep.subr.mxu0 0.0
      %v913 = vand.u32 %v191, 4294901760
      %v914 = vsub.f32 %v191, %v913
      %v915 = vand.u32 %v914, 4294901760
      %916 = vmatpush1.msra.mxu0 %v915
      %917 = vmatprep.subr.mxu0 0.0
      %v918 = vand.u32 %v190, 4294901760
      %v919 = vsub.f32 %v190, %v918
      %v920 = vand.u32 %v919, 4294901760
      %921 = vmatpush1.msra.mxu0 %v920
      %922 = vmatprep.subr.mxu0 0.0
      %v923 = vand.u32 %v189, 4294901760
      %v924 = vsub.f32 %v189, %v923
      %v925 = vand.u32 %v924, 4294901760
      %926 = vmatpush1.msra.mxu0 %v925
      %927 = vmatprep.subr.mxu0 0.0
      %v928 = vand.u32 %v188, 4294901760
      %v929 = vsub.f32 %v188, %v928
      %v930 = vand.u32 %v929, 4294901760
      %931 = vmatpush1.msra.mxu0 %v930
      %932 = vmatprep.subr.mxu0 0.0
      %v933 = vand.u32 %v187, 4294901760
      %v934 = vsub.f32 %v187, %v933
      %v935 = vand.u32 %v934, 4294901760
      %936 = vmatpush1.msra.mxu0 %v935
      %937 = vmatprep.subr.mxu0 0.0
      %v938 = vand.u32 %v186, 4294901760
      %v939 = vsub.f32 %v186, %v938
      %v940 = vand.u32 %v939, 4294901760
      %941 = vmatpush1.msra.mxu0 %v940
      %942 = vmatprep.subr.mxu0 0.0
      %v943 = vand.u32 %v185, 4294901760
      %v944 = vsub.f32 %v185, %v943
      %v945 = vand.u32 %v944, 4294901760
      %946 = vmatpush1.msra.mxu0 %v945
      %947 = vmatprep.subr.mxu0 0.0
      %v948 = vand.u32 %v184, 4294901760
      %v949 = vsub.f32 %v184, %v948
      %v950 = vand.u32 %v949, 4294901760
      %951 = vmatpush1.msra.mxu0 %v950
      %952 = vmatprep.subr.mxu0 0.0
      %v953 = vand.u32 %v183, 4294901760
      %v954 = vsub.f32 %v183, %v953
      %v955 = vand.u32 %v954, 4294901760
      %956 = vmatpush1.msra.mxu0 %v955
      %957 = vmatprep.subr.mxu0 0.0
      %v958 = vand.u32 %v182, 4294901760
      %v959 = vsub.f32 %v182, %v958
      %v960 = vand.u32 %v959, 4294901760
      %961 = vmatpush1.msra.mxu0 %v960
      %962 = vmatprep.subr.mxu0 0.0
      %v963 = vand.u32 %v181, 4294901760
      %v964 = vsub.f32 %v181, %v963
      %v965 = vand.u32 %v964, 4294901760
      %966 = vmatpush1.msra.mxu0 %v965
      %967 = vmatprep.subr.mxu0 0.0
      %v968 = vand.u32 %v212, 4294901760
      %v969 = vsub.f32 %v212, %v968
      %v970 = vand.u32 %v969, 4294901760
      %971 = vmatpush2.msra.mxu0 %v970
      %972 = vmatprep.subr.mxu0 0.0
      %v973 = vand.u32 %v211, 4294901760
      %v974 = vsub.f32 %v211, %v973
      %v975 = vand.u32 %v974, 4294901760
      %976 = vmatpush2.msra.mxu0 %v975
      %977 = vmatprep.subr.mxu0 0.0
      %v978 = vand.u32 %v210, 4294901760
      %v979 = vsub.f32 %v210, %v978
      %v980 = vand.u32 %v979, 4294901760
      %981 = vmatpush2.msra.mxu0 %v980
      %982 = vmatprep.subr.mxu0 0.0
      %v983 = vand.u32 %v209, 4294901760
      %v984 = vsub.f32 %v209, %v983
      %v985 = vand.u32 %v984, 4294901760
      %986 = vmatpush2.msra.mxu0 %v985
      %987 = vmatprep.subr.mxu0 0.0
      %v988 = vand.u32 %v208, 4294901760
      %v989 = vsub.f32 %v208, %v988
      %v990 = vand.u32 %v989, 4294901760
      %991 = vmatpush2.msra.mxu0 %v990
      %992 = vmatprep.subr.mxu0 0.0
      %v993 = vand.u32 %v207, 4294901760
      %v994 = vsub.f32 %v207, %v993
      %v995 = vand.u32 %v994, 4294901760
      %996 = vmatpush2.msra.mxu0 %v995
      %997 = vmatprep.subr.mxu0 0.0
      %v998 = vand.u32 %v206, 4294901760
      %v999 = vsub.f32 %v206, %v998
      %v1000 = vand.u32 %v999, 4294901760
      %1001 = vmatpush2.msra.mxu0 %v1000
      %1002 = vmatprep.subr.mxu0 0.0
      %v1003 = vand.u32 %v205, 4294901760
      %v1004 = vsub.f32 %v205, %v1003
      %v1005 = vand.u32 %v1004, 4294901760
      %1006 = vmatpush2.msra.mxu0 %v1005
      %1007 = vmatprep.subr.mxu0 0.0
      %v1008 = vand.u32 %v204, 4294901760
      %v1009 = vsub.f32 %v204, %v1008
      %v1010 = vand.u32 %v1009, 4294901760
      %1011 = vmatpush2.msra.mxu0 %v1010
      %1012 = vmatprep.subr.mxu0 0.0
      %v1013 = vand.u32 %v203, 4294901760
      %v1014 = vsub.f32 %v203, %v1013
      %v1015 = vand.u32 %v1014, 4294901760
      %1016 = vmatpush2.msra.mxu0 %v1015
      %1017 = vmatprep.subr.mxu0 0.0
      %v1018 = vand.u32 %v202, 4294901760
      %v1019 = vsub.f32 %v202, %v1018
      %v1020 = vand.u32 %v1019, 4294901760
      %1021 = vmatpush2.msra.mxu0 %v1020
      %1022 = vmatprep.subr.mxu0 0.0
      %v1023 = vand.u32 %v201, 4294901760
      %v1024 = vsub.f32 %v201, %v1023
      %v1025 = vand.u32 %v1024, 4294901760
      %1026 = vmatpush2.msra.mxu0 %v1025
      %1027 = vmatprep.subr.mxu0 0.0
      %v1028 = vand.u32 %v200, 4294901760
      %v1029 = vsub.f32 %v200, %v1028
      %v1030 = vand.u32 %v1029, 4294901760
      %1031 = vmatpush2.msra.mxu0 %v1030
      %1032 = vmatprep.subr.mxu0 0.0
      %v1033 = vand.u32 %v199, 4294901760
      %v1034 = vsub.f32 %v199, %v1033
      %v1035 = vand.u32 %v1034, 4294901760
      %1036 = vmatpush2.msra.mxu0 %v1035
      %1037 = vmatprep.subr.mxu0 0.0
      %v1038 = vand.u32 %v198, 4294901760
      %v1039 = vsub.f32 %v198, %v1038
      %v1040 = vand.u32 %v1039, 4294901760
      %1041 = vmatpush2.msra.mxu0 %v1040
      %1042 = vmatprep.subr.mxu0 0.0
      %v1043 = vand.u32 %v197, 4294901760
      %v1044 = vsub.f32 %v197, %v1043
      %v1045 = vand.u32 %v1044, 4294901760
      %1046 = vmatpush2.msra.mxu0 %v1045
      %v1047 = vand.u32 %v176, 4294901760
      %1048 = vmatprep.mubr.f32.mxu0 %v1047
      %v1049 = vand.u32 %v175, 4294901760
      %1050 = vmatmul.mubr.f32.gmra.mxu0 %v1049
      %v1051 = vpop.f32.mrf.mxu0
      %v1052 = vadd.f32 %v862, %v1051
      %v1053 = vpop.f32.mrf.mxu0
      %v1054 = vand.u32 %v178, 4294901760
      %1055 = vmatprep.mubr.f32.mxu0 %v1054
      %v1056 = vand.u32 %v177, 4294901760
      %1057 = vmatmul.mubr.f32.gmra.mxu0 %v1056
      %v1058 = vpop.f32.mrf.mxu0
      %v1059 = vadd.f32 %v873, %v1058
      %v1060 = vpop.f32.mrf.mxu0
      %v1061 = vand.u32 %v180, 4294901760
      %1062 = vmatprep.mubr.f32.mxu0 %v1061
      %v1063 = vand.u32 %v179, 4294901760
      %1064 = vmatmul.mubr.f32.gmra.mxu0 %v1063
      %v1065 = vpop.f32.mrf.mxu0
      %v1066 = vadd.f32 %v884, %v1065
      %v1067 = vpop.f32.mrf.mxu0
      %1068 = vdwg.mxu0
      %1069 = vmatprep.subr.mxu0 0.0
      %v1070 = vand.u32 %v196, 4294901760
      %1071 = vmatpush1.msra.mxu0 %v1070
      %1072 = vmatprep.subr.mxu0 0.0
      %v1073 = vand.u32 %v195, 4294901760
      %1074 = vmatpush1.msra.mxu0 %v1073
      %1075 = vmatprep.subr.mxu0 0.0
      %v1076 = vand.u32 %v194, 4294901760
      %1077 = vmatpush1.msra.mxu0 %v1076
      %1078 = vmatprep.subr.mxu0 0.0
      %v1079 = vand.u32 %v193, 4294901760
      %1080 = vmatpush1.msra.mxu0 %v1079
      %1081 = vmatprep.subr.mxu0 0.0
      %v1082 = vand.u32 %v192, 4294901760
      %1083 = vmatpush1.msra.mxu0 %v1082
      %1084 = vmatprep.subr.mxu0 0.0
      %v1085 = vand.u32 %v191, 4294901760
      %1086 = vmatpush1.msra.mxu0 %v1085
      %1087 = vmatprep.subr.mxu0 0.0
      %v1088 = vand.u32 %v190, 4294901760
      %1089 = vmatpush1.msra.mxu0 %v1088
      %1090 = vmatprep.subr.mxu0 0.0
      %v1091 = vand.u32 %v189, 4294901760
      %1092 = vmatpush1.msra.mxu0 %v1091
      %1093 = vmatprep.subr.mxu0 0.0
      %v1094 = vand.u32 %v188, 4294901760
      %1095 = vmatpush1.msra.mxu0 %v1094
      %1096 = vmatprep.subr.mxu0 0.0
      %v1097 = vand.u32 %v187, 4294901760
      %1098 = vmatpush1.msra.mxu0 %v1097
      %1099 = vmatprep.subr.mxu0 0.0
      %v1100 = vand.u32 %v186, 4294901760
      %1101 = vmatpush1.msra.mxu0 %v1100
      %1102 = vmatprep.subr.mxu0 0.0
      %v1103 = vand.u32 %v185, 4294901760
      %1104 = vmatpush1.msra.mxu0 %v1103
      %1105 = vmatprep.subr.mxu0 0.0
      %v1106 = vand.u32 %v184, 4294901760
      %1107 = vmatpush1.msra.mxu0 %v1106
      %1108 = vmatprep.subr.mxu0 0.0
      %v1109 = vand.u32 %v183, 4294901760
      %1110 = vmatpush1.msra.mxu0 %v1109
      %1111 = vmatprep.subr.mxu0 0.0
      %v1112 = vand.u32 %v182, 4294901760
      %1113 = vmatpush1.msra.mxu0 %v1112
      %1114 = vmatprep.subr.mxu0 0.0
      %v1115 = vand.u32 %v181, 4294901760
      %1116 = vmatpush1.msra.mxu0 %v1115
      %1117 = vmatprep.subr.mxu0 0.0
      %v1118 = vand.u32 %v212, 4294901760
      %1119 = vmatpush2.msra.mxu0 %v1118
      %1120 = vmatprep.subr.mxu0 0.0
      %v1121 = vand.u32 %v211, 4294901760
      %1122 = vmatpush2.msra.mxu0 %v1121
      %1123 = vmatprep.subr.mxu0 0.0
      %v1124 = vand.u32 %v210, 4294901760
      %1125 = vmatpush2.msra.mxu0 %v1124
      %1126 = vmatprep.subr.mxu0 0.0
      %v1127 = vand.u32 %v209, 4294901760
      %1128 = vmatpush2.msra.mxu0 %v1127
      %1129 = vmatprep.subr.mxu0 0.0
      %v1130 = vand.u32 %v208, 4294901760
      %1131 = vmatpush2.msra.mxu0 %v1130
      %1132 = vmatprep.subr.mxu0 0.0
      %v1133 = vand.u32 %v207, 4294901760
      %1134 = vmatpush2.msra.mxu0 %v1133
      %1135 = vmatprep.subr.mxu0 0.0
      %v1136 = vand.u32 %v206, 4294901760
      %1137 = vmatpush2.msra.mxu0 %v1136
      %1138 = vmatprep.subr.mxu0 0.0
      %v1139 = vand.u32 %v205, 4294901760
      %1140 = vmatpush2.msra.mxu0 %v1139
      %1141 = vmatprep.subr.mxu0 0.0
      %v1142 = vand.u32 %v204, 4294901760
      %1143 = vmatpush2.msra.mxu0 %v1142
      %1144 = vmatprep.subr.mxu0 0.0
      %v1145 = vand.u32 %v203, 4294901760
      %1146 = vmatpush2.msra.mxu0 %v1145
      %1147 = vmatprep.subr.mxu0 0.0
      %v1148 = vand.u32 %v202, 4294901760
      %1149 = vmatpush2.msra.mxu0 %v1148
      %1150 = vmatprep.subr.mxu0 0.0
      %v1151 = vand.u32 %v201, 4294901760
      %1152 = vmatpush2.msra.mxu0 %v1151
      %1153 = vmatprep.subr.mxu0 0.0
      %v1154 = vand.u32 %v200, 4294901760
      %1155 = vmatpush2.msra.mxu0 %v1154
      %1156 = vmatprep.subr.mxu0 0.0
      %v1157 = vand.u32 %v199, 4294901760
      %1158 = vmatpush2.msra.mxu0 %v1157
      %1159 = vmatprep.subr.mxu0 0.0
      %v1160 = vand.u32 %v198, 4294901760
      %1161 = vmatpush2.msra.mxu0 %v1160
      %1162 = vmatprep.subr.mxu0 0.0
      %v1163 = vand.u32 %v197, 4294901760
      %1164 = vmatpush2.msra.mxu0 %v1163
      %v1165 = vand.u32 %v176, 4294901760
      %1166 = vmatprep.mubr.f32.mxu0 %v1165
      %v1167 = vand.u32 %v175, 4294901760
      %1168 = vmatmul.mubr.f32.gmra.mxu0 %v1167
      %v1169 = vpop.f32.mrf.mxu0
      %v1170 = vadd.f32 %v1052, %v1169
      %v1171 = vpop.f32.mrf.mxu0
      %v1172 = vand.u32 %v178, 4294901760
      %1173 = vmatprep.mubr.f32.mxu0 %v1172
      %v1174 = vand.u32 %v177, 4294901760
      %1175 = vmatmul.mubr.f32.gmra.mxu0 %v1174
      %v1176 = vpop.f32.mrf.mxu0
      %v1177 = vadd.f32 %v1059, %v1176
      %v1178 = vpop.f32.mrf.mxu0
      %v1179 = vand.u32 %v180, 4294901760
      %1180 = vmatprep.mubr.f32.mxu0 %v1179
      %v1181 = vand.u32 %v179, 4294901760
      %1182 = vmatmul.mubr.f32.gmra.mxu0 %v1181
      %v1183 = vpop.f32.mrf.mxu0
      %v1184 = vadd.f32 %v1066, %v1183
      %v1185 = vpop.f32.mrf.mxu0
      %1186 = vdwg.mxu0
      %vm1187 = vcmask 31744
      %1188 = vst.msk [vmem:[%s174] sm:$0xff] %vm1187, %v1170
      %1189 = vst.msk [vmem:[%s174 + $0x8] sm:$0xff] %vm1187, %v1177
      %vm1190 = vcmask 28672
      %1191 = vst.msk [vmem:[%s174 + $0x10] sm:$0x1f] %vm1190, %v1184
      %p1192 = scmp.lt.s32.totalorder %s17, 1
      %s1193 = scalar_select %p1192, %s17, 1
      %p1194 = scmp.lt.s32.totalorder %s18, 0
      %s1195 = scalar_select %p1194, %s18, 0
      %s1196 = smul.addr %s1193, 3
      %s1197 = sadd.s32 %s1195, %s1196
      %s1198 = smul.addr %s1197, 8
      %s1199 = scalar_lea.vmem %s2, %s1198
      // Predicated region
      $region29: #{tpu_custom_call.1} parent=27 // pred_check
        %p1200 = pneg %p94
      $region30: #{tpu_custom_call.1} parent=27 // pred_check_branch
        %1202 = sbr.rel (%p1200) target = $region32
      $region31: #{tpu_custom_call.1} parent=27 // pred_region
        _
      $region32: #{tpu_custom_call.1} parent=27 // pred_fallthru
        _
    $region28: #{tpu_custom_call.1} parent=5 // pred_fallthru
      _
    %p1203 = scmp.le.s32.totalorder 2, %s8
    // Predicated region
    $region33: #{tpu_custom_call.1} parent=5 // pred_check
      %p1204 = pneg %p1203
    $region34: #{tpu_custom_call.1} parent=5 // pred_check_branch
      %1206 = sbr.rel (%p1204) target = $region36
    $region35: #{tpu_custom_call.1} parent=5 // pred_region
      %s1207 = ssub.s32 %s8, 2
      // Predicated region
      $region37: #{tpu_custom_call.1} parent=35 // pred_check
        %p1208 = pneg %p100
      $region38: #{tpu_custom_call.1} parent=35 // pred_check_branch
        %1210 = sbr.rel (%p1208) target = $region40
      $region39: #{tpu_custom_call.1} parent=35 // pred_region
        %p1211 = scmp.lt.s32.totalorder %s19, 1
        %s1212 = scalar_select %p1211, %s19, 1
        %p1213 = scmp.lt.s32.totalorder %s20, 0
        %s1214 = scalar_select %p1213, %s20, 0
        %s1215 = smul.addr %s1212, 3
        %s1216 = sadd.s32 %s1214, %s1215
        %s1217 = smul.addr %s1216, 8
        %s1218 = scalar_lea.vmem %s2, %s1217
      $region40: #{tpu_custom_call.1} parent=35 // pred_fallthru
        _
    $region36: #{tpu_custom_call.1} parent=5 // pred_fallthru
      _
  $region6: #{tpu_custom_call.1} parent=0 // loop_footer
    %s12 = sadd.s32 1, %s8
  $region7: #{tpu_custom_call.1} parent=0 // loop_footer_branch
    %7 = sbr.rel target = $region3
  $region8: #{tpu_custom_call.1} parent=0 // loop_exit
    _

</llo_original>
